<compile_context>
chip_gen: v6e
topology: v6e:2x2x1
jax: 0.10.0
libtpu: 0.0.40
codegen_flags: <defaults>
</compile_context>

<pallas_src>
import functools

import jax
import jax.numpy as jnp
from jax.experimental import pallas as pl
from jax.experimental.pallas import tpu as pltpu

_LANES = 128
_SUBLANES = 8


def _round_up(a: int, b: int) -> int:
    return ((a + b - 1) // b) * b


def _freq_bands(num_freqs: int, logscale: bool):
    """Pure-Python frequency bands (no device round-trip at trace time)."""
    if num_freqs <= 0:
        return ()
    if logscale:
        return tuple(float(2.0 ** k) for k in range(num_freqs))
    if num_freqs == 1:
        return (1.0,)
    hi = 2.0 ** (num_freqs - 1)
    step = (hi - 1.0) / (num_freqs - 1)
    return tuple(float(1.0 + step * k) for k in range(num_freqs))


def _posi_kernel(x_ref, o_ref, *, freq_bands, use_double_angle, reseed_every=4):
    """One lane-dense (tm, 128) tile -> (2F+1, tm, 128) slab-major output."""
    x_in = x_ref[...]
    o_ref[0] = x_in.astype(o_ref.dtype)          # slab 0: passthrough store
    if not freq_bands:
        return
    x = x_in.astype(jnp.float32)

    if use_double_angle:
        # Bands are exactly 1, 2, 4, ...: one sin/cos per 4 bands, the rest via
        # the VPU double-angle recurrence (reseed bounds error accumulation).
        s = c = None
        for k, f in enumerate(freq_bands):
            if k % reseed_every == 0:
                fx = x if f == 1.0 else f * x     # f = 2^k is exact in f32
                s, c = jnp.sin(fx), jnp.cos(fx)
            else:
                # sin(2a) = 2 sin a cos a ; cos(2a) = 1 - 2 sin^2 a  (old s, c)
                s, c = 2.0 * s * c, 1.0 - 2.0 * s * s
            o_ref[1 + 2 * k] = s.astype(o_ref.dtype)
            o_ref[2 + 2 * k] = c.astype(o_ref.dtype)
    else:
        for k, f in enumerate(freq_bands):
            fx = f * x
            o_ref[1 + 2 * k] = jnp.sin(fx).astype(o_ref.dtype)
            o_ref[2 + 2 * k] = jnp.cos(fx).astype(o_ref.dtype)


def posi_embedding(x, num_freqs: int, logscale: bool = True, *,
                   out_dtype=None, slab_major: bool = False,
                   vmem_budget_bytes: int = 12 * 1024 * 1024):
    """JAX/Pallas equivalent of PosiEmbedding.forward.

    x: array of shape (..., D).
    Returns (..., D * (1 + 2*num_freqs)), matching the PyTorch concat order.
    With slab_major=True, returns the kernel-native (1 + 2*num_freqs, ..., D)
    layout (no wrapper permutation); consumers fold the permutation into their
    first matmul weights.
    """
    freq_bands = _freq_bands(num_freqs, logscale)
    n_slabs = 1 + 2 * len(freq_bands)
    if n_slabs == 1:
        return x

    out_dtype = jnp.dtype(x.dtype if out_dtype is None else out_dtype)
    orig_shape = x.shape
    d = orig_shape[-1]
    n_total = 1
    for s in orig_shape:
        n_total *= s

    # Lane-dense flat view (rows, 128); pad only to a multiple of 8*128.
    n_pad = _round_up(max(n_total, 1), _SUBLANES * _LANES)
    r = n_pad // _LANES                                   # multiple of 8

    # Dtype-aware tile sizing against a double-buffered in+out VMEM budget.
    in_item = jnp.dtype(x.dtype).itemsize
    bytes_per_row = 2 * _LANES * (in_item + n_slabs * out_dtype.itemsize)
    tm_budget = max(_SUBLANES,
                    (vmem_budget_bytes // bytes_per_row) // _SUBLANES * _SUBLANES)
    # >= 8 grid steps for large inputs (>= 4 pipelined steps per TC on v7x),
    # with a 512-row floor so each step sits on the HBM-roofline plateau.
    tm = min(tm_budget, max(512, _round_up(pl.cdiv(r, 8), _SUBLANES)))
    tm = max(_SUBLANES, min(tm, r))
    grid = (pl.cdiv(r, tm),)

    x_flat = x.reshape(-1)
    pad = n_pad - n_total
    if pad:
        x_flat = jnp.pad(x_flat, (0, pad))
    x2 = x_flat.reshape(r, _LANES)

    kernel = functools.partial(_posi_kernel, freq_bands=freq_bands,
                               use_double_angle=logscale)

    vmem_limit = int(min(96 * 1024 * 1024,
                         max(8 * 1024 * 1024,
                             bytes_per_row * tm + 4 * 1024 * 1024)))

    out_slabs = pl.pallas_call(
        kernel,
        out_shape=jax.ShapeDtypeStruct((n_slabs, r, _LANES), out_dtype),
        grid=grid,
        in_specs=[pl.BlockSpec((tm, _LANES), lambda i: (i, 0))],
        out_specs=pl.BlockSpec((n_slabs, tm, _LANES), lambda i: (0, i, 0)),
        compiler_params=pltpu.CompilerParams(
            dimension_semantics=("parallel",),
            vmem_limit_bytes=vmem_limit),
    )(x2)

    flat = out_slabs.reshape(n_slabs, r * _LANES)
    if pad:
        flat = flat[:, :n_total]
    slabbed = flat.reshape((n_slabs,) + orig_shape)        # (2F+1, ..., D)
    if slab_major:
        return slabbed                                     # zero-permutation path
    # Exact PyTorch layout: last-dim interleave done once by XLA.
    out = jnp.moveaxis(slabbed, 0, -2)                     # (..., 2F+1, D)
    return out.reshape(orig_shape[:-1] + (n_slabs * d,))


def _reference(x, num_freqs: int, logscale: bool = True):
    """Pure-JAX reference mirroring the PyTorch forward exactly."""
    out = [x]
    for f in _freq_bands(num_freqs, logscale):
        out.append(jnp.sin(f * x))
        out.append(jnp.cos(f * x))
    return jnp.concatenate(out, axis=-1)


if __name__ == "__main__":
    k1, k2, k3 = jax.random.split(jax.random.PRNGKey(0), 3)

    # Case 1: small input, logscale, num_freqs=4 -> (2, 8, 4*(1+2*4)) = (2, 8, 36)
    x1 = jax.random.normal(k1, (2, 8, 4), dtype=jnp.float32)
    f1 = jax.jit(functools.partial(posi_embedding, num_freqs=4, logscale=True))
    out1 = jax.block_until_ready(f1(x1))
    ref1 = _reference(x1, 4, True)
    assert out1.shape == ref1.shape == (2, 8, 36), out1.shape
    assert jnp.allclose(out1, ref1, atol=1e-4, rtol=1e-4), \
        float(jnp.max(jnp.abs(out1 - ref1)))

    # Slab-major fast path (consumer folds the permutation into its weights).
    slab1 = jax.block_until_ready(posi_embedding(x1, 4, True, slab_major=True))
    assert slab1.shape == (9, 2, 8, 4), slab1.shape
    assert jnp.allclose(jnp.moveaxis(slab1, 0, -2).reshape(2, 8, 36), ref1,
                        atol=1e-4, rtol=1e-4)

    # Case 2: standard NeRF num_freqs=10, D=3, unaligned total length
    # (exercises the 8*128 pad path and the reseeded double-angle recurrence).
    # Tolerance 2e-4: f32 range reduction at 2^9 * x plus one doubling step.
    x2 = jax.random.uniform(k2, (2, 33, 3), dtype=jnp.float32,
                            minval=-1.0, maxval=1.0)
    f2 = jax.jit(functools.partial(posi_embedding, num_freqs=10, logscale=True))
    out2 = jax.block_until_ready(f2(x2))
    ref2 = _reference(x2, 10, True)
    assert out2.shape == ref2.shape == (2, 33, 63), out2.shape
    assert jnp.allclose(out2, ref2, atol=2e-4, rtol=2e-4), \
        float(jnp.max(jnp.abs(out2 - ref2)))

    # Case 3: non-logscale bands (direct per-band evaluation path).
    x3 = jax.random.normal(k3, (3, 5), dtype=jnp.float32)
    out3 = jax.block_until_ready(posi_embedding(x3, 3, logscale=False))
    ref3 = _reference(x3, 3, False)
    assert out3.shape == ref3.shape == (3, 35), out3.shape
    assert jnp.allclose(out3, ref3, atol=1e-5, rtol=1e-5), \
        float(jnp.max(jnp.abs(out3 - ref3)))

    print("KERNEL_OK")
</pallas_src>

<mosaic_0001>
module attributes {stable_mosaic.version = 11 : i64} {
  func.func @_posi_kernel(%arg0: i32, %arg1: memref<8x128xf32, #tpu.memory_space<vmem>>, %arg2: memref<9x8x128xf32, #tpu.memory_space<vmem>>) attributes {dimension_semantics = [#tpu.dimension_semantics<parallel>], iteration_bounds = array<i64: 1>, scalar_prefetch = 0 : i64, scratch_operands = 0 : i64, tpu.core_type = #tpu.core_type<tc>, window_params = [{transform_indices = @transform_0, window_bounds = array<i64: 8, 128>}, {transform_indices = @transform_1, window_bounds = array<i64: 9, 8, 128>}]} {
    %c0 = arith.constant 0 : index
    %c0_0 = arith.constant 0 : index
    %0 = vector.load %arg1[%c0, %c0_0] : memref<8x128xf32, #tpu.memory_space<vmem>>, vector<8x128xf32>
    %c0_1 = arith.constant 0 : index
    %c0_2 = arith.constant 0 : index
    %c0_3 = arith.constant 0 : index
    %1 = vector.load %arg2[%c0_1, %c0_2, %c0_3] : memref<9x8x128xf32, #tpu.memory_space<vmem>>, vector<1x8x128xf32>
    %2 = vector.shape_cast %1 : vector<1x8x128xf32> to vector<8x128xf32>
    %3 = vector.shape_cast %0 : vector<8x128xf32> to vector<1x8x128xf32>
    tpu.vector_store %arg2[%c0_1, %c0_2, %c0_3], %3 {strides = array<i32>} : memref<9x8x128xf32, #tpu.memory_space<vmem>>, vector<1x8x128xf32>,
    %4 = math.sin %0 : vector<8x128xf32>
    %5 = math.cos %0 : vector<8x128xf32>
    %c1 = arith.constant 1 : index
    %c0_4 = arith.constant 0 : index
    %c0_5 = arith.constant 0 : index
    %6 = vector.load %arg2[%c1, %c0_4, %c0_5] : memref<9x8x128xf32, #tpu.memory_space<vmem>>, vector<1x8x128xf32>
    %7 = vector.shape_cast %6 : vector<1x8x128xf32> to vector<8x128xf32>
    %8 = vector.shape_cast %4 : vector<8x128xf32> to vector<1x8x128xf32>
    tpu.vector_store %arg2[%c1, %c0_4, %c0_5], %8 {strides = array<i32>} : memref<9x8x128xf32, #tpu.memory_space<vmem>>, vector<1x8x128xf32>,
    %c2 = arith.constant 2 : index
    %c0_6 = arith.constant 0 : index
    %c0_7 = arith.constant 0 : index
    %9 = vector.load %arg2[%c2, %c0_6, %c0_7] : memref<9x8x128xf32, #tpu.memory_space<vmem>>, vector<1x8x128xf32>
    %10 = vector.shape_cast %9 : vector<1x8x128xf32> to vector<8x128xf32>
    %11 = vector.shape_cast %5 : vector<8x128xf32> to vector<1x8x128xf32>
    tpu.vector_store %arg2[%c2, %c0_6, %c0_7], %11 {strides = array<i32>} : memref<9x8x128xf32, #tpu.memory_space<vmem>>, vector<1x8x128xf32>,
    %cst = arith.constant 2.000000e+00 : f32
    %12 = vector.broadcast %cst : f32 to vector<8x128xf32>
    %13 = arith.mulf %12, %4 : vector<8x128xf32>
    %14 = arith.mulf %13, %5 : vector<8x128xf32>
    %cst_8 = arith.constant 2.000000e+00 : f32
    %15 = vector.broadcast %cst_8 : f32 to vector<8x128xf32>
    %16 = arith.mulf %15, %4 : vector<8x128xf32>
    %17 = arith.mulf %16, %4 : vector<8x128xf32>
    %cst_9 = arith.constant 1.000000e+00 : f32
    %18 = vector.broadcast %cst_9 : f32 to vector<8x128xf32>
    %19 = arith.subf %18, %17 : vector<8x128xf32>
    %c3 = arith.constant 3 : index
    %c0_10 = arith.constant 0 : index
    %c0_11 = arith.constant 0 : index
    %20 = vector.load %arg2[%c3, %c0_10, %c0_11] : memref<9x8x128xf32, #tpu.memory_space<vmem>>, vector<1x8x128xf32>
    %21 = vector.shape_cast %20 : vector<1x8x128xf32> to vector<8x128xf32>
    %22 = vector.shape_cast %14 : vector<8x128xf32> to vector<1x8x128xf32>
    tpu.vector_store %arg2[%c3, %c0_10, %c0_11], %22 {strides = array<i32>} : memref<9x8x128xf32, #tpu.memory_space<vmem>>, vector<1x8x128xf32>,
    %c4 = arith.constant 4 : index
    %c0_12 = arith.constant 0 : index
    %c0_13 = arith.constant 0 : index
    %23 = vector.load %arg2[%c4, %c0_12, %c0_13] : memref<9x8x128xf32, #tpu.memory_space<vmem>>, vector<1x8x128xf32>
    %24 = vector.shape_cast %23 : vector<1x8x128xf32> to vector<8x128xf32>
    %25 = vector.shape_cast %19 : vector<8x128xf32> to vector<1x8x128xf32>
    tpu.vector_store %arg2[%c4, %c0_12, %c0_13], %25 {strides = array<i32>} : memref<9x8x128xf32, #tpu.memory_space<vmem>>, vector<1x8x128xf32>,
    %cst_14 = arith.constant 2.000000e+00 : f32
    %26 = vector.broadcast %cst_14 : f32 to vector<8x128xf32>
    %27 = arith.mulf %26, %14 : vector<8x128xf32>
    %28 = arith.mulf %27, %19 : vector<8x128xf32>
    %cst_15 = arith.constant 2.000000e+00 : f32
    %29 = vector.broadcast %cst_15 : f32 to vector<8x128xf32>
    %30 = arith.mulf %29, %14 : vector<8x128xf32>
    %31 = arith.mulf %30, %14 : vector<8x128xf32>
    %cst_16 = arith.constant 1.000000e+00 : f32
    %32 = vector.broadcast %cst_16 : f32 to vector<8x128xf32>
    %33 = arith.subf %32, %31 : vector<8x128xf32>
    %c5 = arith.constant 5 : index
    %c0_17 = arith.constant 0 : index
    %c0_18 = arith.constant 0 : index
    %34 = vector.load %arg2[%c5, %c0_17, %c0_18] : memref<9x8x128xf32, #tpu.memory_space<vmem>>, vector<1x8x128xf32>
    %35 = vector.shape_cast %34 : vector<1x8x128xf32> to vector<8x128xf32>
    %36 = vector.shape_cast %28 : vector<8x128xf32> to vector<1x8x128xf32>
    tpu.vector_store %arg2[%c5, %c0_17, %c0_18], %36 {strides = array<i32>} : memref<9x8x128xf32, #tpu.memory_space<vmem>>, vector<1x8x128xf32>,
    %c6 = arith.constant 6 : index
    %c0_19 = arith.constant 0 : index
    %c0_20 = arith.constant 0 : index
    %37 = vector.load %arg2[%c6, %c0_19, %c0_20] : memref<9x8x128xf32, #tpu.memory_space<vmem>>, vector<1x8x128xf32>
    %38 = vector.shape_cast %37 : vector<1x8x128xf32> to vector<8x128xf32>
    %39 = vector.shape_cast %33 : vector<8x128xf32> to vector<1x8x128xf32>
    tpu.vector_store %arg2[%c6, %c0_19, %c0_20], %39 {strides = array<i32>} : memref<9x8x128xf32, #tpu.memory_space<vmem>>, vector<1x8x128xf32>,
    %cst_21 = arith.constant 2.000000e+00 : f32
    %40 = vector.broadcast %cst_21 : f32 to vector<8x128xf32>
    %41 = arith.mulf %40, %28 : vector<8x128xf32>
    %42 = arith.mulf %41, %33 : vector<8x128xf32>
    %cst_22 = arith.constant 2.000000e+00 : f32
    %43 = vector.broadcast %cst_22 : f32 to vector<8x128xf32>
    %44 = arith.mulf %43, %28 : vector<8x128xf32>
    %45 = arith.mulf %44, %28 : vector<8x128xf32>
    %cst_23 = arith.constant 1.000000e+00 : f32
    %46 = vector.broadcast %cst_23 : f32 to vector<8x128xf32>
    %47 = arith.subf %46, %45 : vector<8x128xf32>
    %c7 = arith.constant 7 : index
    %c0_24 = arith.constant 0 : index
    %c0_25 = arith.constant 0 : index
    %48 = vector.load %arg2[%c7, %c0_24, %c0_25] : memref<9x8x128xf32, #tpu.memory_space<vmem>>, vector<1x8x128xf32>
    %49 = vector.shape_cast %48 : vector<1x8x128xf32> to vector<8x128xf32>
    %50 = vector.shape_cast %42 : vector<8x128xf32> to vector<1x8x128xf32>
    tpu.vector_store %arg2[%c7, %c0_24, %c0_25], %50 {strides = array<i32>} : memref<9x8x128xf32, #tpu.memory_space<vmem>>, vector<1x8x128xf32>,
    %c8 = arith.constant 8 : index
    %c0_26 = arith.constant 0 : index
    %c0_27 = arith.constant 0 : index
    %51 = vector.load %arg2[%c8, %c0_26, %c0_27] : memref<9x8x128xf32, #tpu.memory_space<vmem>>, vector<1x8x128xf32>
    %52 = vector.shape_cast %51 : vector<1x8x128xf32> to vector<8x128xf32>
    %53 = vector.shape_cast %47 : vector<8x128xf32> to vector<1x8x128xf32>
    tpu.vector_store %arg2[%c8, %c0_26, %c0_27], %53 {strides = array<i32>} : memref<9x8x128xf32, #tpu.memory_space<vmem>>, vector<1x8x128xf32>,
    return
  }
  func.func @transform_0(%arg0: i32) -> (i32, i32) {
    %c0_i32 = arith.constant 0 : i32
    %c0_i32_0 = arith.constant 0 : i32
    return %arg0, %c0_i32 : i32, i32
  }
  func.func @transform_1(%arg0: i32) -> (i32, i32, i32) {
    %c0_i32 = arith.constant 0 : i32
    %c0_i32_0 = arith.constant 0 : i32
    %c0_i32_1 = arith.constant 0 : i32
    return %c0_i32, %arg0, %c0_i32_0 : i32, i32, i32
  }
}

</mosaic_0001>

<llo_original>
// kernel: posi_embedding.1
$region0: #{posi_embedding.1}
  #allocation0 [shape = 'u32[]', space=smem, size = 0x4, offset = 0x4, fixed_abs, tag = 'smem constant byte address 0x4 - core index']
  #allocation1 [shape = 'u32[144,128]{1,0:T(1,128)}', space=vmem, size = 0x12000, scoped, tag = 'internal scratch']
  %s0 = inlined_call_operand.vmem [shape: f32[8,128], index: 0, kind: input, shape index: {}]
  %s1 = inlined_call_operand.vmem [shape: f32[9,8,128], index: 1, kind: output, shape index: {}]
  %s2 = sld [smem:[#allocation0]]
  $region14: #{posi_embedding.1} parent=0
    _
  %s4 = ssub.s32 1, %s2
  %s5 = scalar_select 0, %s4, %s2
  // Predicated region
  $region2: #{posi_embedding.1} parent=0 // pred_check
    _
  $region3: #{posi_embedding.1} parent=0 // pred_check_branch
    %7 = sbr.rel (0) target = $region5
  $region4: #{posi_embedding.1} parent=0 // pred_region
    _
  $region5: #{posi_embedding.1} parent=0 // pred_fallthru
    _
  %v8 = vld [vmem:[%s0] sm:$0xff]
  %9 = vst [vmem:[%s1] sm:$0xff] %v8
  %v10 = vand.u32 2147483647, %v8
  %vm11 = vcmp.le.f32.partialorder %v10, 0.7853982
  %vm12 = vcmp.lt.s32.totalorder %v8, 0
  %v13 = vand.u32 %v8, 2139095040
  %v14 = vshrl.u32 %v13, 23
  %v15 = vsub.s32 %v14, 127
  %v16 = vand.u32 2147483647, %v8
  %v17 = vand.u32 %v16, 8388607
  %v18 = vor.u32 %v17, 8388608
  %v19 = vsub.s32 0, %v18
  %v20 = vadd.s32 %v15, 1
  %vm21 = vcmp.gt.s32.totalorder %v20, 0
  %v22 = vsel %vm21, %v20, 0
  %v23 = vshrl.u32 %v22, 5
  %v24 = vand.u32 %v22, 31
  %v25 = vsub.s32 32, %v24
  %v26 = vshrl.u32 683565275, %v25
  %v27 = vshll.u32 683565275, %v24
  %v28 = vshrl.u32 2475754826, %v25
  %v29 = vor.u32 %v27, %v28
  %v30 = vshll.u32 2475754826, %v24
  %v31 = vshrl.u32 2131351028, %v25
  %v32 = vor.u32 %v30, %v31
  %v33 = vshll.u32 2131351028, %v24
  %v34 = vshrl.u32 2102212464, %v25
  %v35 = vor.u32 %v33, %v34
  %v36 = vshll.u32 2102212464, %v24
  %v37 = vshrl.u32 920167782, %v25
  %v38 = vor.u32 %v36, %v37
  %v39 = vshll.u32 920167782, %v24
  %v40 = vshrl.u32 1326507024, %v25
  %v41 = vor.u32 %v39, %v40
  %vm42 = vcmp.lt.s32.totalorder %v23, 1
  %vm43 = vcmp.lt.s32.totalorder %v23, 2
  %vm44 = vcmp.lt.s32.totalorder %v23, 3
  %vm45 = vcmp.lt.s32.totalorder %v23, 4
  %v46 = vsel %vm42, %v26, %v29
  %v47 = vsel %vm45, %v35, 2102212464
  %v48 = vsel %vm44, %v32, %v47
  %v49 = vsel %vm43, %v46, %v48
  %v50 = vsel %vm42, %v29, %v32
  %v51 = vsel %vm45, %v38, 920167782
  %v52 = vsel %vm44, %v35, %v51
  %v53 = vsel %vm43, %v50, %v52
  %v54 = vsel %vm42, %v32, %v35
  %v55 = vsel %vm45, %v41, 1326507024
  %v56 = vsel %vm44, %v38, %v55
  %v57 = vsel %vm43, %v54, %v56
  %v58 = vshll.u32 %v18, 8
  %v59 = vmul.u32.u64.compose %v58, %v57
  %v60 = vextract.low.u32 %v59
  %v61 = vextract.high.u32 %v59
  %v62 = vmul.u32.u64.compose %v58, %v53
  %v63 = vextract.low.u32 %v62
  %v64 = vextract.high.u32 %v62
  %v65 = vmul.u32 %v58, %v49
  %v66 = vadd.s32 %v61, %v63
  %vm67 = vc.u32 %v61, %v63
  %v68 = vadd.s32 %v64, 1
  %v69 = vsel %vm67, %v68, %v64
  %v70 = vadd.s32 %v65, %v69
  %v71 = vadd.s32 %v70, 536870912
  %v72 = vshrl.u32 %v71, 30
  %v73 = vshll.u32 %v72, 30
  %v74 = vsub.s32 %v70, %v73
  %vm75 = vcmp.lt.s32.totalorder %v74, 0
  %v76 = vsub.s32 0, %v74
  %v77 = vsel %vm75, %v76, %v74
  %v78 = vclz %v77
  %v79 = vsub.s32 %v78, 2
  %vm80 = vcmp.gt.s32.totalorder 0, %v79
  %v81 = vsel %vm80, 0, %v79
  %v82 = vsub.s32 32, %v81
  %v83 = vshll.u32 %v74, %v81
  %v84 = vshrl.u32 %v66, %v82
  %v85 = vor.u32 %v83, %v84
  %v86 = vsub.s32 4294967266, %v81
  %v87 = vadd.s32 %v86, 127
  %v88 = vshll.u32 %v87, 23
  %v89 = vor.u32 4788187, %v88
  %v90 = vand.u32 2147483647, %v89
  %v92 = vcvt.s32.f32 %v85
  %v93 = vmul.f32 %v92, %v90
  %v94 = vxor.u32 %v93, 2147483648
  %v95 = vsel %vm12, %v94, %v93
  %v96 = vsub.s32 4, %v72
  %v97 = vsel %vm12, %v96, %v72
  %v98 = vsel %vm11, %v8, %v95
  %v99 = vsel %vm11, 0, %v97
  %v100 = vcosq.f32.pop %v98
  %v101 = vsinq.f32.pop %v98
  %vm102 = vweird.f32 %v8
  %v103 = vadd.s32 %v99, 3
  %v104 = vand.u32 %v103, 3
  %vm105 = vcmp.lt.s32.totalorder %v104, 2
  %vm106 = vcmp.eq.s32.totalorder %v104, 0
  %v107 = vxor.u32 %v101, 2147483648
  %v108 = vsel %vm106, %v100, %v107
  %vm109 = vcmp.eq.s32.totalorder %v104, 2
  %v110 = vxor.u32 %v100, 2147483648
  %v111 = vsel %vm109, %v110, %v101
  %v112 = vsel %vm105, %v108, %v111
  %v113 = vsel %vm102, nan, %v112
  %v114 = vand.u32 2147483647, %v8
  %vm115 = vcmp.le.f32.partialorder %v114, 0.7853982
  %vm116 = vcmp.lt.s32.totalorder %v8, 0
  %v117 = vand.u32 %v8, 2139095040
  %v118 = vshrl.u32 %v117, 23
  %v119 = vsub.s32 %v118, 127
  %v120 = vand.u32 2147483647, %v8
  %v121 = vand.u32 %v120, 8388607
  %v122 = vor.u32 %v121, 8388608
  %v123 = vsub.s32 0, %v122
  %v124 = vadd.s32 %v119, 1
  %vm125 = vcmp.gt.s32.totalorder %v124, 0
  %v126 = vsel %vm125, %v124, 0
  %v127 = vshrl.u32 %v126, 5
  %v128 = vand.u32 %v126, 31
  %v129 = vsub.s32 32, %v128
  %v130 = vshrl.u32 683565275, %v129
  %v131 = vshll.u32 683565275, %v128
  %v132 = vshrl.u32 2475754826, %v129
  %v133 = vor.u32 %v131, %v132
  %v134 = vshll.u32 2475754826, %v128
  %v135 = vshrl.u32 2131351028, %v129
  %v136 = vor.u32 %v134, %v135
  %v137 = vshll.u32 2131351028, %v128
  %v138 = vshrl.u32 2102212464, %v129
  %v139 = vor.u32 %v137, %v138
  %v140 = vshll.u32 2102212464, %v128
  %v141 = vshrl.u32 920167782, %v129
  %v142 = vor.u32 %v140, %v141
  %v143 = vshll.u32 920167782, %v128
  %v144 = vshrl.u32 1326507024, %v129
  %v145 = vor.u32 %v143, %v144
  %vm146 = vcmp.lt.s32.totalorder %v127, 1
  %vm147 = vcmp.lt.s32.totalorder %v127, 2
  %vm148 = vcmp.lt.s32.totalorder %v127, 3
  %vm149 = vcmp.lt.s32.totalorder %v127, 4
  %v150 = vsel %vm146, %v130, %v133
  %v151 = vsel %vm149, %v139, 2102212464
  %v152 = vsel %vm148, %v136, %v151
  %v153 = vsel %vm147, %v150, %v152
  %v154 = vsel %vm146, %v133, %v136
  %v155 = vsel %vm149, %v142, 920167782
  %v156 = vsel %vm148, %v139, %v155
  %v157 = vsel %vm147, %v154, %v156
  %v158 = vsel %vm146, %v136, %v139
  %v159 = vsel %vm149, %v145, 1326507024
  %v160 = vsel %vm148, %v142, %v159
  %v161 = vsel %vm147, %v158, %v160
  %v162 = vshll.u32 %v122, 8
  %v163 = vmul.u32.u64.compose %v162, %v161
  %v164 = vextract.low.u32 %v163
  %v165 = vextract.high.u32 %v163
  %v166 = vmul.u32.u64.compose %v162, %v157
  %v167 = vextract.low.u32 %v166
  %v168 = vextract.high.u32 %v166
  %v169 = vmul.u32 %v162, %v153
  %v170 = vadd.s32 %v165, %v167
  %vm171 = vc.u32 %v165, %v167
  %v172 = vadd.s32 %v168, 1
  %v173 = vsel %vm171, %v172, %v168
  %v174 = vadd.s32 %v169, %v173
  %v175 = vadd.s32 %v174, 536870912
  %v176 = vshrl.u32 %v175, 30
  %v177 = vshll.u32 %v176, 30
  %v178 = vsub.s32 %v174, %v177
  %vm179 = vcmp.lt.s32.totalorder %v178, 0
  %v180 = vsub.s32 0, %v178
  %v181 = vsel %vm179, %v180, %v178
  %v182 = vclz %v181
  %v183 = vsub.s32 %v182, 2
  %vm184 = vcmp.gt.s32.totalorder 0, %v183
  %v185 = vsel %vm184, 0, %v183
  %v186 = vsub.s32 32, %v185
  %v187 = vshll.u32 %v178, %v185
  %v188 = vshrl.u32 %v170, %v186
  %v189 = vor.u32 %v187, %v188
  %v190 = vsub.s32 4294967266, %v185
  %v191 = vadd.s32 %v190, 127
  %v192 = vshll.u32 %v191, 23
  %v193 = vor.u32 4788187, %v192
  %v194 = vand.u32 2147483647, %v193
  %v196 = vcvt.s32.f32 %v189
  %v197 = vmul.f32 %v196, %v194
  %v198 = vxor.u32 %v197, 2147483648
  %v199 = vsel %vm116, %v198, %v197
  %v200 = vsub.s32 4, %v176
  %v201 = vsel %vm116, %v200, %v176
  %v202 = vsel %vm115, %v8, %v199
  %v203 = vsel %vm115, 0, %v201
  %v204 = vcosq.f32.pop %v202
  %v205 = vsinq.f32.pop %v202
  %vm206 = vweird.f32 %v8
  %v207 = vand.u32 %v203, 3
  %vm208 = vcmp.lt.s32.totalorder %v207, 2
  %vm209 = vcmp.eq.s32.totalorder %v207, 0
  %v210 = vxor.u32 %v205, 2147483648
  %v211 = vsel %vm209, %v204, %v210
  %vm212 = vcmp.eq.s32.totalorder %v207, 2
  %v213 = vxor.u32 %v204, 2147483648
  %v214 = vsel %vm212, %v213, %v205
  %v215 = vsel %vm208, %v211, %v214
  %v216 = vsel %vm206, nan, %v215
  %s217 = scalar_lea.vmem %s1, 8
  %218 = vst [vmem:[%s217] sm:$0xff] %v113
  %s219 = scalar_lea.vmem %s1, 16
  %220 = vst [vmem:[%s219] sm:$0xff] %v216
  %v221 = vmul.f32 %v113, 2.0
  %v222 = vmul.f32 %v221, %v216
  %v223 = vmul.f32 %v221, %v113
  %v224 = vsub.f32 1.0, %v223
  %s225 = scalar_lea.vmem %s1, 24
  %226 = vst [vmem:[%s225] sm:$0xff] %v222
  %s227 = scalar_lea.vmem %s1, 32
  %228 = vst [vmem:[%s227] sm:$0xff] %v224
  %v229 = vmul.f32 %v222, 2.0
  %v230 = vmul.f32 %v229, %v224
  %v231 = vmul.f32 %v229, %v222
  %v232 = vsub.f32 1.0, %v231
  %s233 = scalar_lea.vmem %s1, 40
  %234 = vst [vmem:[%s233] sm:$0xff] %v230
  %s235 = scalar_lea.vmem %s1, 48
  %236 = vst [vmem:[%s235] sm:$0xff] %v232
  %v237 = vmul.f32 %v230, 2.0
  %v238 = vmul.f32 %v237, %v232
  %v239 = vmul.f32 %v237, %v230
  %v240 = vsub.f32 1.0, %v239
  %s241 = scalar_lea.vmem %s1, 56
  %242 = vst [vmem:[%s241] sm:$0xff] %v238
  %s243 = scalar_lea.vmem %s1, 64
  %244 = vst [vmem:[%s243] sm:$0xff] %v240
  // Predicated region
  $region6: #{posi_embedding.1} parent=0 // pred_check
    _
  $region7: #{posi_embedding.1} parent=0 // pred_check_branch
    %246 = sbr.rel (0) target = $region9
  $region8: #{posi_embedding.1} parent=0 // pred_region
    _
  $region9: #{posi_embedding.1} parent=0 // pred_fallthru
    _
  // Predicated region
  $region10: #{posi_embedding.1} parent=0 // pred_check
    _
  $region11: #{posi_embedding.1} parent=0 // pred_check_branch
    %248 = sbr.rel (0) target = $region13
  $region12: #{posi_embedding.1} parent=0 // pred_region
    _
  $region13: #{posi_embedding.1} parent=0 // pred_fallthru
    _

</llo_original>
